<compile_context>
chip_gen: v5e
topology: v5e:2x2
jax: 0.10.0
libtpu: 0.0.40
codegen_flags: <defaults>
</compile_context>

<pallas_src>
import functools

import jax
import jax.numpy as jnp
import numpy as np
from jax.experimental import pallas as pl
from jax.experimental.pallas import tpu as pltpu

EPS = 1e-5          # PyTorch BatchNorm2d default eps
NEG_SLOPE = 0.2     # LeakyReLU slope
LANE = 128          # TPU lane width
MAX_SINGLE_K = 1024 # above this the contraction dim is tiled
TK = 512            # K tile when tiling (multiple of 256: feeds v6e/v7x 256-wide MXU)


def _round_up(x, m):
    return ((x + m - 1) // m) * m


def _vmem_cap_bytes():
    """Generation-aware VMEM cap (~75% of capacity, conservative fallback)."""
    try:
        cap = int(pltpu.get_tpu_info().vmem_capacity_bytes)
    except Exception:
        cap = 64 << 20                      # assume v7x-sized VMEM if query fails
    return max((3 * cap) // 4, 16 << 20)


def _vmem_limit_bytes(entries, cap):
    """entries: (shape, itemsize, n_buffers). Headroom added, clamped to cap."""
    est = sum(int(np.prod(s)) * int(isz) * int(nb) for s, isz, nb in entries)
    return int(min(max(3 * est // 2 + (2 << 20), 16 << 20), cap))


# --------------------------------------------------------------------------
# Pass 1: conv-as-matmul (MXU, bf16 in / f32 acc) over (M, K) grid
#         + per-M-block partial BN statistics (f32).
# --------------------------------------------------------------------------
def conv_stats_kernel(p_ref, w_ref, y_ref, sum_ref, ssq_ref, acc_ref):
    k = pl.program_id(1)

    @pl.when(k == 0)
    def _():
        acc_ref[...] = jnp.zeros_like(acc_ref)

    acc_ref[...] += jnp.dot(p_ref[...], w_ref[...],
                            preferred_element_type=jnp.float32)

    @pl.when(k == pl.num_programs(1) - 1)
    def _():
        acc = acc_ref[...]
        # bf16 intermediate: halves this write and the pass-2 read.
        y_ref[...] = acc.astype(y_ref.dtype)
        # Per-M-block partial sum / sum-of-squares in f32 (from the unrounded
        # accumulator). Written as an (1, 8, Cp) block; wrapper reads row 0.
        s = jnp.sum(acc, axis=0, keepdims=True)          # (1, Cp)
        q = jnp.sum(acc * acc, axis=0, keepdims=True)    # (1, Cp)
        sum_ref[...] = jnp.broadcast_to(s[None], sum_ref.shape)
        ssq_ref[...] = jnp.broadcast_to(q[None], ssq_ref.shape)


# --------------------------------------------------------------------------
# Pass 2: folded BN affine (y*scale + shift) fused with LeakyReLU(0.2).
# --------------------------------------------------------------------------
def bn_lrelu_kernel(y_ref, scale_ref, shift_ref, o_ref):
    z = y_ref[...].astype(jnp.float32) * scale_ref[...] + shift_ref[...]
    o_ref[...] = jnp.where(z > 0, z, NEG_SLOPE * z)


def conv_block(x, w, gamma, beta, *, stride=2, padding=1):
    """x: (N, C_in, H, W); w: (C_out, C_in, KH, KW); gamma/beta: (C_out,).

    Conv2d (bias dropped: a no-op under training-mode BN) -> BatchNorm2d
    (batch statistics) -> LeakyReLU(0.2). Returns NCHW f32.
    """
    N, C, H, W = x.shape
    C_out, C_in, KH, KW = w.shape
    assert C == C_in
    OH = (H + 2 * padding - KH) // stride + 1
    OW = (W + 2 * padding - KW) // stride + 1

    M = N * OH * OW
    K = C_in * KH * KW
    Cp = _round_up(C_out, LANE)

    # Contraction tiling: a single unpadded-K block when small (masked lanes are
    # a good trade in the mem-bound regime), otherwise TK-wide chunks so the
    # per-step VMEM footprint is bounded independently of C_in.
    if K <= MAX_SINGLE_K:
        Kp = _round_up(K, 16)       # bf16 sublane alignment only; no lane padding
        tk = Kp
    else:
        Kp = _round_up(K, TK)
        tk = TK
    num_k = Kp // tk

    # Row tiling. Pass-2 tile is a multiple of the pass-1 tile so a single
    # padded row count Mp is divisible by both.
    tm = min(512, _round_up(max(M, 8), 8))
    tm2 = min(2048, tm * max(1, min(4, pl.cdiv(M, tm))))
    Mp = _round_up(M, tm2)
    num_m = Mp // tm
    num_m2 = Mp // tm2

    # ---- glue: pad + im2col in plain JAX, entirely in bf16 -----------------
    xp = jnp.pad(x.astype(jnp.bfloat16),
                 ((0, 0), (0, 0), (padding, padding), (padding, padding)))
    cols = []
    for kh in range(KH):
        for kw in range(KW):
            cols.append(xp[:, :, kh:kh + stride * OH:stride,
                               kw:kw + stride * OW:stride])
    p = jnp.stack(cols, axis=0)              # (KH*KW, N, C, OH, OW) bf16
    p = p.transpose(1, 3, 4, 2, 0)           # (N, OH, OW, C, KH*KW)
    p = p.reshape(M, K)
    p = jnp.pad(p, ((0, Mp - M), (0, Kp - K)))            # zero pad: harmless

    w2 = w.reshape(C_out, K).T.astype(jnp.bfloat16)       # (K, C_out)
    w2 = jnp.pad(w2, ((0, Kp - K), (0, Cp - C_out)))      # (Kp, Cp)

    g = jnp.pad(gamma.astype(jnp.float32).reshape(1, -1), ((0, 0), (0, Cp - C_out)))
    bt = jnp.pad(beta.astype(jnp.float32).reshape(1, -1), ((0, 0), (0, Cp - C_out)))

    cap = _vmem_cap_bytes()

    # ---- pass 1: matmul (M parallel, K arbitrary) + partial stats ----------
    vmem1 = _vmem_limit_bytes(
        [((tm, tk), 2, 2),        # patch tile (bf16), double-buffered
         ((tk, Cp), 2, 2),        # weight tile (bf16)
         ((tm, Cp), 2, 2),        # y tile (bf16)
         ((1, 8, Cp), 4, 4),      # two partial-stat blocks (f32)
         ((tm, Cp), 4, 1)], cap)  # f32 accumulator scratch
    y, psum, pssq = pl.pallas_call(
        conv_stats_kernel,
        out_shape=(jax.ShapeDtypeStruct((Mp, Cp), jnp.bfloat16),
                   jax.ShapeDtypeStruct((num_m, 8, Cp), jnp.float32),
                   jax.ShapeDtypeStruct((num_m, 8, Cp), jnp.float32)),
        grid=(num_m, num_k),
        in_specs=[pl.BlockSpec((tm, tk), lambda i, k: (i, k)),
                  pl.BlockSpec((tk, Cp), lambda i, k: (k, 0))],
        out_specs=(pl.BlockSpec((tm, Cp), lambda i, k: (i, 0)),
                   pl.BlockSpec((1, 8, Cp), lambda i, k: (i, 0, 0)),
                   pl.BlockSpec((1, 8, Cp), lambda i, k: (i, 0, 0))),
        scratch_shapes=[pltpu.VMEM((tm, Cp), jnp.float32)],
        compiler_params=pltpu.CompilerParams(
            dimension_semantics=("parallel", "arbitrary"),
            vmem_limit_bytes=vmem1),
    )(p, w2)

    # ---- tiny per-channel math: fold BN into a single scale/shift ----------
    # Zero-padded rows contribute nothing to the partials; divide by the true M.
    col_sum = jnp.sum(psum[:, 0, :], axis=0, keepdims=True)    # (1, Cp)
    col_ssq = jnp.sum(pssq[:, 0, :], axis=0, keepdims=True)    # (1, Cp)
    mean = col_sum / M
    # TODO(synk): E[x^2]-E[x]^2 in f32 can cancel badly when |mean| >> std;
    #             switch to a shifted/Welford-style accumulation for such inputs.
    var = jnp.maximum(col_ssq / M - mean * mean, 0.0)   # biased var (training BN)
    scale = g * jax.lax.rsqrt(var + EPS)                # (1, Cp)
    shift = bt - mean * scale                           # (1, Cp)

    # ---- pass 2: BN apply + LeakyReLU, fully parallel over M ---------------
    vmem2 = _vmem_limit_bytes(
        [((tm2, Cp), 2, 2), ((1, Cp), 4, 2), ((1, Cp), 4, 2), ((tm2, Cp), 4, 2)],
        cap)
    out = pl.pallas_call(
        bn_lrelu_kernel,
        out_shape=jax.ShapeDtypeStruct((Mp, Cp), jnp.float32),
        grid=(num_m2,),
        in_specs=[pl.BlockSpec((tm2, Cp), lambda i: (i, 0)),
                  pl.BlockSpec((1, Cp), lambda i: (0, 0)),     # scale resident
                  pl.BlockSpec((1, Cp), lambda i: (0, 0))],    # shift resident
        out_specs=pl.BlockSpec((tm2, Cp), lambda i: (i, 0)),
        compiler_params=pltpu.CompilerParams(
            dimension_semantics=("parallel",),
            vmem_limit_bytes=vmem2),
    )(y, scale, shift)

    # (Mp, Cp) -> valid rows/channels -> NCHW (interface glue, single fused op).
    out = out[:M, :C_out].reshape(N, OH, OW, C_out).transpose(0, 3, 1, 2)
    return out


def ref_forward(x, w, b, gamma, beta):
    """Pure-JAX f32 reference mirroring the PyTorch module (training-mode BN)."""
    y = jax.lax.conv_general_dilated(
        x, w, window_strides=(2, 2), padding=((1, 1), (1, 1)),
        dimension_numbers=("NCHW", "OIHW", "NCHW"))
    y = y + b[None, :, None, None]
    mean = y.mean(axis=(0, 2, 3), keepdims=True)
    var = ((y - mean) ** 2).mean(axis=(0, 2, 3), keepdims=True)
    y = (y - mean) / jnp.sqrt(var + EPS)
    y = y * gamma[None, :, None, None] + beta[None, :, None, None]
    return jnp.where(y > 0, y, NEG_SLOPE * y)


if __name__ == "__main__":
    def make_inputs(key, N, C_in, C_out, H, W, KS=4):
        k_x, k_w, k_b = jax.random.split(key, 3)
        x = jax.random.normal(k_x, (N, C_in, H, W), dtype=jnp.float32)
        fan_in = C_in * KS * KS
        bound = 1.0 / np.sqrt(fan_in)
        w = jax.random.uniform(k_w, (C_out, C_in, KS, KS), minval=-bound,
                               maxval=bound, dtype=jnp.float32)
        b = jax.random.uniform(k_b, (C_out,), minval=-bound, maxval=bound,
                               dtype=jnp.float32)
        gamma = jnp.ones((C_out,), jnp.float32)   # BatchNorm weight init
        beta = jnp.zeros((C_out,), jnp.float32)   # BatchNorm bias init
        return x, w, b, gamma, beta

    fwd = jax.jit(functools.partial(conv_block, stride=2, padding=1))

    # --- main case: batch=2, channels 4->8, spatial 16 (single-K-block path) ---
    x, w, b, gamma, beta = make_inputs(jax.random.PRNGKey(0), 2, 4, 8, 16, 16)
    out = jax.block_until_ready(fwd(x, w, gamma, beta))
    assert out.shape == (2, 8, 8, 8), out.shape

    # (1) Kernel math vs f32 reference on the same bf16-rounded inputs; the
    #     intermediate is now stored in bf16 so tolerance sits at bf16 noise.
    ref_bf16_in = jax.block_until_ready(ref_forward(
        x.astype(jnp.bfloat16).astype(jnp.float32),
        w.astype(jnp.bfloat16).astype(jnp.float32), b, gamma, beta))
    np.testing.assert_allclose(np.asarray(out), np.asarray(ref_bf16_in),
                               atol=5e-3, rtol=5e-3)

    # (2) End-to-end fidelity vs full-f32 PyTorch semantics (bias included in the
    #     reference; dropped in the kernel, exactly cancelled by the BN mean).
    ref = jax.block_until_ready(ref_forward(x, w, b, gamma, beta))
    np.testing.assert_allclose(np.asarray(out), np.asarray(ref),
                               atol=3e-2, rtol=3e-2)

    # --- tiled-contraction path (K = 80*16 = 1280 > MAX_SINGLE_K, num_k = 3) ---
    x2, w2, b2, gamma2, beta2 = make_inputs(jax.random.PRNGKey(1), 1, 80, 8, 8, 8)
    out2 = jax.block_until_ready(fwd(x2, w2, gamma2, beta2))
    ref2 = jax.block_until_ready(ref_forward(
        x2.astype(jnp.bfloat16).astype(jnp.float32),
        w2.astype(jnp.bfloat16).astype(jnp.float32), b2, gamma2, beta2))
    np.testing.assert_allclose(np.asarray(out2), np.asarray(ref2),
                               atol=5e-3, rtol=5e-3)

    print("KERNEL_OK")
</pallas_src>

<mosaic_0001>
module attributes {stable_mosaic.version = 11 : i64} {
  func.func @conv_stats_kernel(%arg0: i32, %arg1: i32, %arg2: memref<128x64xbf16, #tpu.memory_space<vmem>>, %arg3: memref<64x128xbf16, #tpu.memory_space<vmem>>, %arg4: memref<128x128xbf16, #tpu.memory_space<vmem>>, %arg5: memref<1x8x128xf32, #tpu.memory_space<vmem>>, %arg6: memref<1x8x128xf32, #tpu.memory_space<vmem>>, %arg7: memref<128x128xf32, #tpu.memory_space<vmem>>) attributes {dimension_semantics = [#tpu.dimension_semantics<parallel>, #tpu.dimension_semantics<arbitrary>], iteration_bounds = array<i64: 1, 1>, scalar_prefetch = 0 : i64, scratch_operands = 1 : i64, tpu.core_type = #tpu.core_type<tc>, window_params = [{transform_indices = @transform_0, window_bounds = array<i64: 128, 64>}, {transform_indices = @transform_1, window_bounds = array<i64: 64, 128>}, {transform_indices = @transform_2, window_bounds = array<i64: 128, 128>}, {transform_indices = @transform_3, window_bounds = array<i64: 1, 8, 128>}, {transform_indices = @transform_4, window_bounds = array<i64: 1, 8, 128>}]} {
    %c0_i32 = arith.constant 0 : i32
    %0 = arith.cmpi eq, %arg1, %c0_i32 : i32
    %1 = arith.extui %0 : i1 to i32
    %c0_i32_0 = arith.constant 0 : i32
    %2 = arith.cmpi ne, %1, %c0_i32_0 : i32
    scf.if %2 {
      %cst_10 = arith.constant 0.000000e+00 : f32
      %12 = vector.broadcast %cst_10 : f32 to vector<128x128xf32>
      %c0_11 = arith.constant 0 : index
      %c0_12 = arith.constant 0 : index
      %13 = vector.load %arg7[%c0_11, %c0_12] : memref<128x128xf32, #tpu.memory_space<vmem>>, vector<128x128xf32>
      tpu.vector_store %arg7[%c0_11, %c0_12], %12 {strides = array<i32>} : memref<128x128xf32, #tpu.memory_space<vmem>>, vector<128x128xf32>,
    } else {
    }
    %c0 = arith.constant 0 : index
    %c0_1 = arith.constant 0 : index
    %3 = vector.load %arg7[%c0, %c0_1] : memref<128x128xf32, #tpu.memory_space<vmem>>, vector<128x128xf32>
    %c0_2 = arith.constant 0 : index
    %c0_3 = arith.constant 0 : index
    %4 = vector.load %arg2[%c0_2, %c0_3] : memref<128x64xbf16, #tpu.memory_space<vmem>>, vector<128x64xbf16>
    %c0_4 = arith.constant 0 : index
    %c0_5 = arith.constant 0 : index
    %5 = vector.load %arg3[%c0_4, %c0_5] : memref<64x128xbf16, #tpu.memory_space<vmem>>, vector<64x128xbf16>
    %cst = arith.constant dense<0.000000e+00> : vector<128x128xf32>
    %6 = tpu.matmul %4, %5, %cst {dimension_numbers = #tpu.dot_dimension_numbers<[1], [0], [0], [1], [0, 0, 1, 1], [], []>} : vector<128x64xbf16>, vector<64x128xbf16>, vector<128x128xf32> -> vector<128x128xf32>
    %7 = arith.addf %3, %6 : vector<128x128xf32>
    %c0_6 = arith.constant 0 : index
    %c0_7 = arith.constant 0 : index
    %8 = vector.load %arg7[%c0_6, %c0_7] : memref<128x128xf32, #tpu.memory_space<vmem>>, vector<128x128xf32>
    tpu.vector_store %arg7[%c0_6, %c0_7], %7 {strides = array<i32>} : memref<128x128xf32, #tpu.memory_space<vmem>>, vector<128x128xf32>,
    %c0_i32_8 = arith.constant 0 : i32
    %9 = arith.cmpi eq, %arg1, %c0_i32_8 : i32
    %10 = arith.extui %9 : i1 to i32
    %c0_i32_9 = arith.constant 0 : i32
    %11 = arith.cmpi ne, %10, %c0_i32_9 : i32
    scf.if %11 {
      %c0_10 = arith.constant 0 : index
      %c0_11 = arith.constant 0 : index
      %12 = vector.load %arg7[%c0_10, %c0_11] : memref<128x128xf32, #tpu.memory_space<vmem>>, vector<128x128xf32>
      %13 = arith.truncf %12 : vector<128x128xf32> to vector<128x128xbf16>
      %c0_12 = arith.constant 0 : index
      %c0_13 = arith.constant 0 : index
      %14 = vector.load %arg4[%c0_12, %c0_13] : memref<128x128xbf16, #tpu.memory_space<vmem>>, vector<128x128xbf16>
      tpu.vector_store %arg4[%c0_12, %c0_13], %13 {strides = array<i32>} : memref<128x128xbf16, #tpu.memory_space<vmem>>, vector<128x128xbf16>,
      %cst_14 = arith.constant dense<0.000000e+00> : vector<128xf32>
      %15 = vector.multi_reduction <add>, %12, %cst_14 [0] : vector<128x128xf32> to vector<128xf32>
      %16 = vector.shape_cast %15 : vector<128xf32> to vector<1x128xf32>
      %17 = arith.mulf %12, %12 : vector<128x128xf32>
      %cst_15 = arith.constant dense<0.000000e+00> : vector<128xf32>
      %18 = vector.multi_reduction <add>, %17, %cst_15 [0] : vector<128x128xf32> to vector<128xf32>
      %19 = vector.shape_cast %18 : vector<128xf32> to vector<1x128xf32>
      %20 = vector.shape_cast %16 : vector<1x128xf32> to vector<1x1x128xf32>
      %21 = vector.shape_cast %20 : vector<1x1x128xf32> to vector<1x1x128xf32>
      %22 = vector.broadcast %21 : vector<1x1x128xf32> to vector<1x8x128xf32>
      %c0_16 = arith.constant 0 : index
      %c0_17 = arith.constant 0 : index
      %c0_18 = arith.constant 0 : index
      %23 = vector.load %arg5[%c0_16, %c0_17, %c0_18] : memref<1x8x128xf32, #tpu.memory_space<vmem>>, vector<1x8x128xf32>
      tpu.vector_store %arg5[%c0_16, %c0_17, %c0_18], %22 {strides = array<i32>} : memref<1x8x128xf32, #tpu.memory_space<vmem>>, vector<1x8x128xf32>,
      %24 = vector.shape_cast %19 : vector<1x128xf32> to vector<1x1x128xf32>
      %25 = vector.shape_cast %24 : vector<1x1x128xf32> to vector<1x1x128xf32>
      %26 = vector.broadcast %25 : vector<1x1x128xf32> to vector<1x8x128xf32>
      %c0_19 = arith.constant 0 : index
      %c0_20 = arith.constant 0 : index
      %c0_21 = arith.constant 0 : index
      %27 = vector.load %arg6[%c0_19, %c0_20, %c0_21] : memref<1x8x128xf32, #tpu.memory_space<vmem>>, vector<1x8x128xf32>
      tpu.vector_store %arg6[%c0_19, %c0_20, %c0_21], %26 {strides = array<i32>} : memref<1x8x128xf32, #tpu.memory_space<vmem>>, vector<1x8x128xf32>,
    } else {
    }
    return
  }
  func.func @transform_0(%arg0: i32, %arg1: i32) -> (i32, i32) {
    %c0_i32 = arith.constant 0 : i32
    return %arg0, %arg1 : i32, i32
  }
  func.func @transform_1(%arg0: i32, %arg1: i32) -> (i32, i32) {
    %c0_i32 = arith.constant 0 : i32
    %c0_i32_0 = arith.constant 0 : i32
    return %arg1, %c0_i32 : i32, i32
  }
  func.func @transform_2(%arg0: i32, %arg1: i32) -> (i32, i32) {
    %c0_i32 = arith.constant 0 : i32
    %c0_i32_0 = arith.constant 0 : i32
    return %arg0, %c0_i32 : i32, i32
  }
  func.func @transform_3(%arg0: i32, %arg1: i32) -> (i32, i32, i32) {
    %c0_i32 = arith.constant 0 : i32
    %c0_i32_0 = arith.constant 0 : i32
    %c0_i32_1 = arith.constant 0 : i32
    return %arg0, %c0_i32, %c0_i32_0 : i32, i32, i32
  }
  func.func @transform_4(%arg0: i32, %arg1: i32) -> (i32, i32, i32) {
    %c0_i32 = arith.constant 0 : i32
    %c0_i32_0 = arith.constant 0 : i32
    %c0_i32_1 = arith.constant 0 : i32
    return %arg0, %c0_i32, %c0_i32_0 : i32, i32, i32
  }
}

module attributes {stable_mosaic.version = 11 : i64} {
  func.func @bn_lrelu_kernel(%arg0: i32, %arg1: memref<128x128xbf16, #tpu.memory_space<vmem>>, %arg2: memref<1x128xf32, #tpu.memory_space<vmem>>, %arg3: memref<1x128xf32, #tpu.memory_space<vmem>>, %arg4: memref<128x128xf32, #tpu.memory_space<vmem>>) attributes {dimension_semantics = [#tpu.dimension_semantics<parallel>], iteration_bounds = array<i64: 1>, scalar_prefetch = 0 : i64, scratch_operands = 0 : i64, tpu.core_type = #tpu.core_type<tc>, window_params = [{transform_indices = @transform_0, window_bounds = array<i64: 128, 128>}, {pipeline_mode = #tpu.pipeline_mode<synchronous>, transform_indices = @transform_1, window_bounds = array<i64: 1, 128>}, {pipeline_mode = #tpu.pipeline_mode<synchronous>, transform_indices = @transform_2, window_bounds = array<i64: 1, 128>}, {transform_indices = @transform_3, window_bounds = array<i64: 128, 128>}]} {
    %c0 = arith.constant 0 : index
    %c0_0 = arith.constant 0 : index
    %0 = vector.load %arg1[%c0, %c0_0] : memref<128x128xbf16, #tpu.memory_space<vmem>>, vector<128x128xbf16>
    %1 = arith.extf %0 : vector<128x128xbf16> to vector<128x128xf32>
    %c0_1 = arith.constant 0 : index
    %c0_2 = arith.constant 0 : index
    %2 = vector.load %arg2[%c0_1, %c0_2] : memref<1x128xf32, #tpu.memory_space<vmem>>, vector<1x128xf32>
    %3 = vector.broadcast %2 : vector<1x128xf32> to vector<128x128xf32>
    %4 = arith.mulf %1, %3 : vector<128x128xf32>
    %c0_3 = arith.constant 0 : index
    %c0_4 = arith.constant 0 : index
    %5 = vector.load %arg3[%c0_3, %c0_4] : memref<1x128xf32, #tpu.memory_space<vmem>>, vector<1x128xf32>
    %6 = vector.broadcast %5 : vector<1x128xf32> to vector<128x128xf32>
    %7 = arith.addf %4, %6 : vector<128x128xf32>
    %cst = arith.constant 0.000000e+00 : f32
    %8 = vector.broadcast %cst : f32 to vector<128x128xf32>
    %9 = arith.cmpf ogt, %7, %8 : vector<128x128xf32>
    %cst_5 = arith.constant 2.000000e-01 : f32
    %10 = vector.broadcast %cst_5 : f32 to vector<128x128xf32>
    %11 = arith.mulf %10, %7 : vector<128x128xf32>
    %12 = arith.select %9, %7, %11 : vector<128x128xi1>, vector<128x128xf32>
    %c0_6 = arith.constant 0 : index
    %c0_7 = arith.constant 0 : index
    %13 = vector.load %arg4[%c0_6, %c0_7] : memref<128x128xf32, #tpu.memory_space<vmem>>, vector<128x128xf32>
    tpu.vector_store %arg4[%c0_6, %c0_7], %12 {strides = array<i32>} : memref<128x128xf32, #tpu.memory_space<vmem>>, vector<128x128xf32>,
    return
  }
  func.func @transform_0(%arg0: i32) -> (i32, i32) {
    %c0_i32 = arith.constant 0 : i32
    %c0_i32_0 = arith.constant 0 : i32
    return %arg0, %c0_i32 : i32, i32
  }
  func.func @transform_1(%arg0: i32) -> (i32, i32) {
    %c0_i32 = arith.constant 0 : i32
    %c0_i32_0 = arith.constant 0 : i32
    %c0_i32_1 = arith.constant 0 : i32
    return %c0_i32, %c0_i32_0 : i32, i32
  }
  func.func @transform_2(%arg0: i32) -> (i32, i32) {
    %c0_i32 = arith.constant 0 : i32
    %c0_i32_0 = arith.constant 0 : i32
    %c0_i32_1 = arith.constant 0 : i32
    return %c0_i32, %c0_i32_0 : i32, i32
  }
  func.func @transform_3(%arg0: i32) -> (i32, i32) {
    %c0_i32 = arith.constant 0 : i32
    %c0_i32_0 = arith.constant 0 : i32
    return %arg0, %c0_i32 : i32, i32
  }
}

</mosaic_0001>

<llo_original>
// kernel: conv_block.3
$region0: #{conv_block.3}
  #allocation0 [shape = 'u32[]', space=smem, size = 0x4, offset = 0x4, fixed_abs, tag = 'smem constant byte address 0x4 - core index']
  #allocation1 [shape = 'u32[72,128]{1,0:T(1,128)}', space=vmem, size = 0x9000, scoped, tag = 'internal scratch']
  %s0 = inlined_call_operand.vmem [shape: bf16[128,128], index: 0, kind: input, shape index: {}]
  %s1 = inlined_call_operand.vmem [shape: f32[1,128], index: 1, kind: input, shape index: {}]
  %s2 = inlined_call_operand.vmem [shape: f32[1,128], index: 2, kind: input, shape index: {}]
  %s3 = inlined_call_operand.vmem [shape: f32[128,128], index: 3, kind: output, shape index: {}]
  %s4 = sld [smem:[#allocation0]]
  $region22: #{conv_block.3} parent=0
    _
  %s6 = ssub.s32 1, %s4
  %s7 = scalar_select 0, %s6, %s4
  // Predicated region
  $region2: #{conv_block.3} parent=0 // pred_check
    _
  $region3: #{conv_block.3} parent=0 // pred_check_branch
    %9 = sbr.rel (0) target = $region5
  $region4: #{conv_block.3} parent=0 // pred_region
    _
  $region5: #{conv_block.3} parent=0 // pred_fallthru
    _
  // Predicated region
  $region6: #{conv_block.3} parent=0 // pred_check
    _
  $region7: #{conv_block.3} parent=0 // pred_check_branch
    %11 = sbr.rel (0) target = $region9
  $region8: #{conv_block.3} parent=0 // pred_region
    _
  $region9: #{conv_block.3} parent=0 // pred_fallthru
    _
  // Predicated region
  $region10: #{conv_block.3} parent=0 // pred_check
    _
  $region11: #{conv_block.3} parent=0 // pred_check_branch
    %13 = sbr.rel (0) target = $region13
  $region12: #{conv_block.3} parent=0 // pred_region
    _
  $region13: #{conv_block.3} parent=0 // pred_fallthru
    _
  %v14 = vld [vmem:[%s0] sm:$0xf]
  %v15 = vld [vmem:[%s0 + $0x4] sm:$0xf]
  %v16 = vld [vmem:[%s0 + $0x8] sm:$0xf]
  %v17 = vld [vmem:[%s0 + $0xc] sm:$0xf]
  %v18 = vld [vmem:[%s0 + $0x10] sm:$0xf]
  %v19 = vld [vmem:[%s0 + $0x14] sm:$0xf]
  %v20 = vld [vmem:[%s0 + $0x18] sm:$0xf]
  %v21 = vld [vmem:[%s0 + $0x1c] sm:$0xf]
  %v22 = vld [vmem:[%s0 + $0x20] sm:$0xf]
  %v23 = vld [vmem:[%s0 + $0x24] sm:$0xf]
  %v24 = vld [vmem:[%s0 + $0x28] sm:$0xf]
  %v25 = vld [vmem:[%s0 + $0x2c] sm:$0xf]
  %v26 = vld [vmem:[%s0 + $0x30] sm:$0xf]
  %v27 = vld [vmem:[%s0 + $0x34] sm:$0xf]
  %v28 = vld [vmem:[%s0 + $0x38] sm:$0xf]
  %v29 = vld [vmem:[%s0 + $0x3c] sm:$0xf]
  %v30 = vunpack.c.l.bf16 %v14
  %v31 = vunpack.c.l.bf16 %v15
  %v32 = vunpack.c.l.bf16 %v16
  %v33 = vunpack.c.l.bf16 %v17
  %v34 = vunpack.c.l.bf16 %v18
  %v35 = vunpack.c.l.bf16 %v19
  %v36 = vunpack.c.l.bf16 %v20
  %v37 = vunpack.c.l.bf16 %v21
  %v38 = vunpack.c.l.bf16 %v22
  %v39 = vunpack.c.l.bf16 %v23
  %v40 = vunpack.c.l.bf16 %v24
  %v41 = vunpack.c.l.bf16 %v25
  %v42 = vunpack.c.l.bf16 %v26
  %v43 = vunpack.c.l.bf16 %v27
  %v44 = vunpack.c.l.bf16 %v28
  %v45 = vunpack.c.l.bf16 %v29
  %v46 = vld [vmem:[%s1] sm:$0x1]
  %v48 = vperm.slane %v46, 0
  %v50 = vmul.f32 %v30, %v48
  %v51 = vmul.f32 %v31, %v48
  %v52 = vmul.f32 %v32, %v48
  %v53 = vmul.f32 %v33, %v48
  %v54 = vmul.f32 %v34, %v48
  %v55 = vmul.f32 %v35, %v48
  %v56 = vmul.f32 %v36, %v48
  %v57 = vmul.f32 %v37, %v48
  %v58 = vmul.f32 %v38, %v48
  %v59 = vmul.f32 %v39, %v48
  %v60 = vmul.f32 %v40, %v48
  %v61 = vmul.f32 %v41, %v48
  %v62 = vmul.f32 %v42, %v48
  %v63 = vmul.f32 %v43, %v48
  %v64 = vmul.f32 %v44, %v48
  %v65 = vmul.f32 %v45, %v48
  %v66 = vld [vmem:[%s2] sm:$0x1]
  %v68 = vperm.slane %v66, 0
  %v70 = vadd.f32 %v50, %v68
  %v71 = vadd.f32 %v51, %v68
  %v72 = vadd.f32 %v52, %v68
  %v73 = vadd.f32 %v53, %v68
  %v74 = vadd.f32 %v54, %v68
  %v75 = vadd.f32 %v55, %v68
  %v76 = vadd.f32 %v56, %v68
  %v77 = vadd.f32 %v57, %v68
  %v78 = vadd.f32 %v58, %v68
  %v79 = vadd.f32 %v59, %v68
  %v80 = vadd.f32 %v60, %v68
  %v81 = vadd.f32 %v61, %v68
  %v82 = vadd.f32 %v62, %v68
  %v83 = vadd.f32 %v63, %v68
  %v84 = vadd.f32 %v64, %v68
  %v85 = vadd.f32 %v65, %v68
  %vm86 = vcmp.gt.f32.partialorder %v70, 0.0
  %vm87 = vcmp.gt.f32.partialorder %v71, 0.0
  %vm88 = vcmp.gt.f32.partialorder %v72, 0.0
  %vm89 = vcmp.gt.f32.partialorder %v73, 0.0
  %vm90 = vcmp.gt.f32.partialorder %v74, 0.0
  %vm91 = vcmp.gt.f32.partialorder %v75, 0.0
  %vm92 = vcmp.gt.f32.partialorder %v76, 0.0
  %vm93 = vcmp.gt.f32.partialorder %v77, 0.0
  %vm94 = vcmp.gt.f32.partialorder %v78, 0.0
  %vm95 = vcmp.gt.f32.partialorder %v79, 0.0
  %vm96 = vcmp.gt.f32.partialorder %v80, 0.0
  %vm97 = vcmp.gt.f32.partialorder %v81, 0.0
  %vm98 = vcmp.gt.f32.partialorder %v82, 0.0
  %vm99 = vcmp.gt.f32.partialorder %v83, 0.0
  %vm100 = vcmp.gt.f32.partialorder %v84, 0.0
  %vm101 = vcmp.gt.f32.partialorder %v85, 0.0
  %v102 = vmul.f32 %v70, 0.2
  %v103 = vmul.f32 %v71, 0.2
  %v104 = vmul.f32 %v72, 0.2
  %v105 = vmul.f32 %v73, 0.2
  %v106 = vmul.f32 %v74, 0.2
  %v107 = vmul.f32 %v75, 0.2
  %v108 = vmul.f32 %v76, 0.2
  %v109 = vmul.f32 %v77, 0.2
  %v110 = vmul.f32 %v78, 0.2
  %v111 = vmul.f32 %v79, 0.2
  %v112 = vmul.f32 %v80, 0.2
  %v113 = vmul.f32 %v81, 0.2
  %v114 = vmul.f32 %v82, 0.2
  %v115 = vmul.f32 %v83, 0.2
  %v116 = vmul.f32 %v84, 0.2
  %v117 = vmul.f32 %v85, 0.2
  %v118 = vsel %vm86, %v70, %v102
  %v119 = vsel %vm87, %v71, %v103
  %v120 = vsel %vm88, %v72, %v104
  %v121 = vsel %vm89, %v73, %v105
  %v122 = vsel %vm90, %v74, %v106
  %v123 = vsel %vm91, %v75, %v107
  %v124 = vsel %vm92, %v76, %v108
  %v125 = vsel %vm93, %v77, %v109
  %v126 = vsel %vm94, %v78, %v110
  %v127 = vsel %vm95, %v79, %v111
  %v128 = vsel %vm96, %v80, %v112
  %v129 = vsel %vm97, %v81, %v113
  %v130 = vsel %vm98, %v82, %v114
  %v131 = vsel %vm99, %v83, %v115
  %v132 = vsel %vm100, %v84, %v116
  %v133 = vsel %vm101, %v85, %v117
  %134 = vst [vmem:[%s3] sm:$0xff] %v118
  %135 = vst [vmem:[%s3 + $0x8] sm:$0xff] %v119
  %136 = vst [vmem:[%s3 + $0x10] sm:$0xff] %v120
  %137 = vst [vmem:[%s3 + $0x18] sm:$0xff] %v121
  %138 = vst [vmem:[%s3 + $0x20] sm:$0xff] %v122
  %139 = vst [vmem:[%s3 + $0x28] sm:$0xff] %v123
  %140 = vst [vmem:[%s3 + $0x30] sm:$0xff] %v124
  %141 = vst [vmem:[%s3 + $0x38] sm:$0xff] %v125
  %142 = vst [vmem:[%s3 + $0x40] sm:$0xff] %v126
  %143 = vst [vmem:[%s3 + $0x48] sm:$0xff] %v127
  %144 = vst [vmem:[%s3 + $0x50] sm:$0xff] %v128
  %145 = vst [vmem:[%s3 + $0x58] sm:$0xff] %v129
  %146 = vst [vmem:[%s3 + $0x60] sm:$0xff] %v130
  %147 = vst [vmem:[%s3 + $0x68] sm:$0xff] %v131
  %148 = vst [vmem:[%s3 + $0x70] sm:$0xff] %v132
  %149 = vst [vmem:[%s3 + $0x78] sm:$0xff] %v133
  // Predicated region
  $region14: #{conv_block.3} parent=0 // pred_check
    _
  $region15: #{conv_block.3} parent=0 // pred_check_branch
    %151 = sbr.rel (0) target = $region17
  $region16: #{conv_block.3} parent=0 // pred_region
    _
  $region17: #{conv_block.3} parent=0 // pred_fallthru
    _
  // Predicated region
  $region18: #{conv_block.3} parent=0 // pred_check
    _
  $region19: #{conv_block.3} parent=0 // pred_check_branch
    %153 = sbr.rel (0) target = $region21
  $region20: #{conv_block.3} parent=0 // pred_region
    _
  $region21: #{conv_block.3} parent=0 // pred_fallthru
    _

// kernel: conv_block.2
$region0: #{conv_block.2}
  #allocation0 [shape = 'u32[]', space=smem, size = 0x4, offset = 0x4, fixed_abs, tag = 'smem constant byte address 0x4 - core index']
  #allocation1 [shape = 'u32[72,128]{1,0:T(1,128)}', space=vmem, size = 0x9000, scoped, tag = 'internal scratch']
  #allocation2 [shape = 'f32[128,128]{1,0:T(8,128)}', space=vmem, size = 0x10000, scoped, tag = 'scratch operand']
  %s0 = inlined_call_operand.vmem [shape: bf16[128,64], index: 0, kind: input, shape index: {}]
  %s1 = inlined_call_operand.vmem [shape: bf16[64,128], index: 1, kind: input, shape index: {}]
  %s2 = inlined_call_operand.vmem [shape: bf16[128,128], index: 2, kind: output, shape index: {0}]
  %s3 = inlined_call_operand.vmem [shape: f32[1,8,128], index: 3, kind: output, shape index: {1}]
  %s4 = inlined_call_operand.vmem [shape: f32[1,8,128], index: 4, kind: output, shape index: {2}]
  %5 = xla_tuple %s2, %s3, %s4
  %s6 = sld [smem:[#allocation0]]
  $region42: #{conv_block.2} parent=0
    _
  %s8 = ssub.s32 1, %s6
  %s9 = scalar_select 0, %s8, %s6
  // Predicated region
  $region2: #{conv_block.2} parent=0 // pred_check
    _
  $region3: #{conv_block.2} parent=0 // pred_check_branch
    %11 = sbr.rel (0) target = $region5
  $region4: #{conv_block.2} parent=0 // pred_region
    _
  $region5: #{conv_block.2} parent=0 // pred_fallthru
    _
  // Predicated region
  $region6: #{conv_block.2} parent=0 // pred_check
    _
  $region7: #{conv_block.2} parent=0 // pred_check_branch
    %13 = sbr.rel (0) target = $region9
  $region8: #{conv_block.2} parent=0 // pred_region
    _
  $region9: #{conv_block.2} parent=0 // pred_fallthru
    _
  %p15 = scmp.eq.s32.totalorder 0, 0
  // Predicated region
  $region10: #{conv_block.2} parent=0 // pred_check
    %p16 = pneg %p15
  $region11: #{conv_block.2} parent=0 // pred_check_branch
    %18 = sbr.rel (%p16) target = $region13
  $region12: #{conv_block.2} parent=0 // pred_region
    %19 = vst [vmem:[#allocation2] sm:$0xff] 0.0
    %20 = vst [vmem:[#allocation2 + $0x8] sm:$0xff] 0.0
    %21 = vst [vmem:[#allocation2 + $0x10] sm:$0xff] 0.0
    %22 = vst [vmem:[#allocation2 + $0x18] sm:$0xff] 0.0
    %23 = vst [vmem:[#allocation2 + $0x20] sm:$0xff] 0.0
    %24 = vst [vmem:[#allocation2 + $0x28] sm:$0xff] 0.0
    %25 = vst [vmem:[#allocation2 + $0x30] sm:$0xff] 0.0
    %26 = vst [vmem:[#allocation2 + $0x38] sm:$0xff] 0.0
    %27 = vst [vmem:[#allocation2 + $0x40] sm:$0xff] 0.0
    %28 = vst [vmem:[#allocation2 + $0x48] sm:$0xff] 0.0
    %29 = vst [vmem:[#allocation2 + $0x50] sm:$0xff] 0.0
    %30 = vst [vmem:[#allocation2 + $0x58] sm:$0xff] 0.0
    %31 = vst [vmem:[#allocation2 + $0x60] sm:$0xff] 0.0
    %32 = vst [vmem:[#allocation2 + $0x68] sm:$0xff] 0.0
    %33 = vst [vmem:[#allocation2 + $0x70] sm:$0xff] 0.0
    %34 = vst [vmem:[#allocation2 + $0x78] sm:$0xff] 0.0
  $region13: #{conv_block.2} parent=0 // pred_fallthru
    _
  %v35 = vld [vmem:[#allocation2] sm:$0xff]
  %v36 = vld [vmem:[#allocation2 + $0x8] sm:$0xff]
  %v37 = vld [vmem:[#allocation2 + $0x10] sm:$0xff]
  %v38 = vld [vmem:[#allocation2 + $0x18] sm:$0xff]
  %v39 = vld [vmem:[#allocation2 + $0x20] sm:$0xff]
  %v40 = vld [vmem:[#allocation2 + $0x28] sm:$0xff]
  %v41 = vld [vmem:[#allocation2 + $0x30] sm:$0xff]
  %v42 = vld [vmem:[#allocation2 + $0x38] sm:$0xff]
  %v43 = vld [vmem:[#allocation2 + $0x40] sm:$0xff]
  %v44 = vld [vmem:[#allocation2 + $0x48] sm:$0xff]
  %v45 = vld [vmem:[#allocation2 + $0x50] sm:$0xff]
  %v46 = vld [vmem:[#allocation2 + $0x58] sm:$0xff]
  %v47 = vld [vmem:[#allocation2 + $0x60] sm:$0xff]
  %v48 = vld [vmem:[#allocation2 + $0x68] sm:$0xff]
  %v49 = vld [vmem:[#allocation2 + $0x70] sm:$0xff]
  %v50 = vld [vmem:[#allocation2 + $0x78] sm:$0xff]
  %v51 = vld [vmem:[%s0] sm:$0xf]
  %v52 = vld [vmem:[%s0 + $0x4] sm:$0xf]
  %v53 = vld [vmem:[%s0 + $0x8] sm:$0xf]
  %v54 = vld [vmem:[%s0 + $0xc] sm:$0xf]
  %v55 = vld [vmem:[%s0 + $0x10] sm:$0xf]
  %v56 = vld [vmem:[%s0 + $0x14] sm:$0xf]
  %v57 = vld [vmem:[%s0 + $0x18] sm:$0xf]
  %v58 = vld [vmem:[%s0 + $0x1c] sm:$0xf]
  %v59 = vld [vmem:[%s0 + $0x20] sm:$0xf]
  %v60 = vld [vmem:[%s0 + $0x24] sm:$0xf]
  %v61 = vld [vmem:[%s0 + $0x28] sm:$0xf]
  %v62 = vld [vmem:[%s0 + $0x2c] sm:$0xf]
  %v63 = vld [vmem:[%s0 + $0x30] sm:$0xf]
  %v64 = vld [vmem:[%s0 + $0x34] sm:$0xf]
  %v65 = vld [vmem:[%s0 + $0x38] sm:$0xf]
  %v66 = vld [vmem:[%s0 + $0x3c] sm:$0xf]
  %v67 = vld [vmem:[%s1] sm:$0xf]
  %v68 = vld [vmem:[%s1 + $0x4] sm:$0xf]
  %v69 = vld [vmem:[%s1 + $0x8] sm:$0xf]
  %v70 = vld [vmem:[%s1 + $0xc] sm:$0xf]
  %v71 = vld [vmem:[%s1 + $0x10] sm:$0xf]
  %v72 = vld [vmem:[%s1 + $0x14] sm:$0xf]
  %v73 = vld [vmem:[%s1 + $0x18] sm:$0xf]
  %v74 = vld [vmem:[%s1 + $0x1c] sm:$0xf]
  %v91 = vunpack.c.l.b16 %v51
  %v92 = vunpack.c.l.b16 %v52
  %v93 = vunpack.c.l.b16 %v53
  %v94 = vunpack.c.l.b16 %v54
  %v95 = vunpack.c.l.b16 %v55
  %v96 = vunpack.c.l.b16 %v56
  %v97 = vunpack.c.l.b16 %v57
  %v98 = vunpack.c.l.b16 %v58
  %v99 = vunpack.c.l.b16 %v59
  %v100 = vunpack.c.l.b16 %v60
  %v101 = vunpack.c.l.b16 %v61
  %v102 = vunpack.c.l.b16 %v62
  %v103 = vunpack.c.l.b16 %v63
  %v104 = vunpack.c.l.b16 %v64
  %v105 = vunpack.c.l.b16 %v65
  %v106 = vunpack.c.l.b16 %v66
  %v107 = vpack.c.b16 %v92, %v91
  %v108 = vpack.c.b16 %v94, %v93
  %v109 = vpack.c.b16 %v96, %v95
  %v110 = vpack.c.b16 %v98, %v97
  %v111 = vpack.c.b16 %v100, %v99
  %v112 = vpack.c.b16 %v102, %v101
  %v113 = vpack.c.b16 %v104, %v103
  %v114 = vpack.c.b16 %v106, %v105
  %v123 = vunpack.c.l.b16 %v67
  %v124 = vunpack.c.l.b16 %v68
  %v125 = vunpack.c.l.b16 %v69
  %v126 = vunpack.c.l.b16 %v70
  %v127 = vunpack.c.l.b16 %v71
  %v128 = vunpack.c.l.b16 %v72
  %v129 = vunpack.c.l.b16 %v73
  %v130 = vunpack.c.l.b16 %v74
  %v131 = vpack.c.b16 %v124, %v123
  %v132 = vpack.c.b16 %v126, %v125
  %v133 = vpack.c.b16 %v128, %v127
  %v134 = vpack.c.b16 %v130, %v129
  %vm139 = vcmask 523264
  %v141 = vsel %vm139, %v107, 0
  %v144 = vsel %vm139, %v108, 0
  %v147 = vsel %vm139, %v109, 0
  %v150 = vsel %vm139, %v110, 0
  %v153 = vsel %vm139, %v111, 0
  %v156 = vsel %vm139, %v112, 0
  %v159 = vsel %vm139, %v113, 0
  %v162 = vsel %vm139, %v114, 0
  %164 = vmatpush.bf16.msra.mxu0 0
  %165 = vmatpush.bf16.msra.mxu0 0
  %166 = vmatpush.bf16.msra.mxu0 0
  %167 = vmatpush.bf16.msra.mxu0 0
  %168 = vmatpush.bf16.msra.mxu0 %v134
  %169 = vmatpush.bf16.msra.mxu0 %v133
  %170 = vmatpush.bf16.msra.mxu0 %v132
  %171 = vmatpush.bf16.msra.mxu0 %v131
  %172 = vmatmul.bf16.gmra.mxu0 %v141
  %v173 = vpop.f32.mrf.mxu0
  %v174 = vadd.f32 0.0, %v173
  %v175 = vpop.f32.mrf.mxu0
  %v176 = vadd.f32 0.0, %v175
  %177 = vmatmul.bf16.gmra.mxu0 %v144
  %v178 = vpop.f32.mrf.mxu0
  %v179 = vadd.f32 0.0, %v178
  %v180 = vpop.f32.mrf.mxu0
  %v181 = vadd.f32 0.0, %v180
  %182 = vmatmul.bf16.gmra.mxu0 %v147
  %v183 = vpop.f32.mrf.mxu0
  %v184 = vadd.f32 0.0, %v183
  %v185 = vpop.f32.mrf.mxu0
  %v186 = vadd.f32 0.0, %v185
  %187 = vmatmul.bf16.gmra.mxu0 %v150
  %v188 = vpop.f32.mrf.mxu0
  %v189 = vadd.f32 0.0, %v188
  %v190 = vpop.f32.mrf.mxu0
  %v191 = vadd.f32 0.0, %v190
  %192 = vmatmul.bf16.gmra.mxu0 %v153
  %v193 = vpop.f32.mrf.mxu0
  %v194 = vadd.f32 0.0, %v193
  %v195 = vpop.f32.mrf.mxu0
  %v196 = vadd.f32 0.0, %v195
  %197 = vmatmul.bf16.gmra.mxu0 %v156
  %v198 = vpop.f32.mrf.mxu0
  %v199 = vadd.f32 0.0, %v198
  %v200 = vpop.f32.mrf.mxu0
  %v201 = vadd.f32 0.0, %v200
  %202 = vmatmul.bf16.gmra.mxu0 %v159
  %v203 = vpop.f32.mrf.mxu0
  %v204 = vadd.f32 0.0, %v203
  %v205 = vpop.f32.mrf.mxu0
  %v206 = vadd.f32 0.0, %v205
  %207 = vmatmul.bf16.gmra.mxu0 %v162
  %v208 = vpop.f32.mrf.mxu0
  %v209 = vadd.f32 0.0, %v208
  %v210 = vpop.f32.mrf.mxu0
  %v211 = vadd.f32 0.0, %v210
  %212 = vdwg.mxu0
  %v213 = vadd.f32 %v35, %v174
  %v214 = vadd.f32 %v36, %v176
  %v215 = vadd.f32 %v37, %v179
  %v216 = vadd.f32 %v38, %v181
  %v217 = vadd.f32 %v39, %v184
  %v218 = vadd.f32 %v40, %v186
  %v219 = vadd.f32 %v41, %v189
  %v220 = vadd.f32 %v42, %v191
  %v221 = vadd.f32 %v43, %v194
  %v222 = vadd.f32 %v44, %v196
  %v223 = vadd.f32 %v45, %v199
  %v224 = vadd.f32 %v46, %v201
  %v225 = vadd.f32 %v47, %v204
  %v226 = vadd.f32 %v48, %v206
  %v227 = vadd.f32 %v49, %v209
  %v228 = vadd.f32 %v50, %v211
  %229 = vst [vmem:[#allocation2] sm:$0xff] %v213
  %230 = vst [vmem:[#allocation2 + $0x8] sm:$0xff] %v214
  %231 = vst [vmem:[#allocation2 + $0x10] sm:$0xff] %v215
  %232 = vst [vmem:[#allocation2 + $0x18] sm:$0xff] %v216
  %233 = vst [vmem:[#allocation2 + $0x20] sm:$0xff] %v217
  %234 = vst [vmem:[#allocation2 + $0x28] sm:$0xff] %v218
  %235 = vst [vmem:[#allocation2 + $0x30] sm:$0xff] %v219
  %236 = vst [vmem:[#allocation2 + $0x38] sm:$0xff] %v220
  %237 = vst [vmem:[#allocation2 + $0x40] sm:$0xff] %v221
  %238 = vst [vmem:[#allocation2 + $0x48] sm:$0xff] %v222
  %239 = vst [vmem:[#allocation2 + $0x50] sm:$0xff] %v223
  %240 = vst [vmem:[#allocation2 + $0x58] sm:$0xff] %v224
  %241 = vst [vmem:[#allocation2 + $0x60] sm:$0xff] %v225
  %242 = vst [vmem:[#allocation2 + $0x68] sm:$0xff] %v226
  %243 = vst [vmem:[#allocation2 + $0x70] sm:$0xff] %v227
  %244 = vst [vmem:[#allocation2 + $0x78] sm:$0xff] %v228
  // Predicated region
  $region14: #{conv_block.2} parent=0 // pred_check
    %p245 = pneg %p15
  $region15: #{conv_block.2} parent=0 // pred_check_branch
    %247 = sbr.rel (%p245) target = $region17
  $region16: #{conv_block.2} parent=0 // pred_region
    %v248 = vld [vmem:[#allocation2] sm:$0xff]
    %v249 = vld [vmem:[#allocation2 + $0x8] sm:$0xff]
    %v250 = vld [vmem:[#allocation2 + $0x10] sm:$0xff]
    %v251 = vld [vmem:[#allocation2 + $0x18] sm:$0xff]
    %v252 = vld [vmem:[#allocation2 + $0x20] sm:$0xff]
    %v253 = vld [vmem:[#allocation2 + $0x28] sm:$0xff]
    %v254 = vld [vmem:[#allocation2 + $0x30] sm:$0xff]
    %v255 = vld [vmem:[#allocation2 + $0x38] sm:$0xff]
    %v256 = vld [vmem:[#allocation2 + $0x40] sm:$0xff]
    %v257 = vld [vmem:[#allocation2 + $0x48] sm:$0xff]
    %v258 = vld [vmem:[#allocation2 + $0x50] sm:$0xff]
    %v259 = vld [vmem:[#allocation2 + $0x58] sm:$0xff]
    %v260 = vld [vmem:[#allocation2 + $0x60] sm:$0xff]
    %v261 = vld [vmem:[#allocation2 + $0x68] sm:$0xff]
    %v262 = vld [vmem:[#allocation2 + $0x70] sm:$0xff]
    %v263 = vld [vmem:[#allocation2 + $0x78] sm:$0xff]
    %v264 = vpack.c.bf16 %v248, %v248
    %v265 = vpack.c.bf16 %v249, %v249
    %v266 = vpack.c.bf16 %v250, %v250
    %v267 = vpack.c.bf16 %v251, %v251
    %v268 = vpack.c.bf16 %v252, %v252
    %v269 = vpack.c.bf16 %v253, %v253
    %v270 = vpack.c.bf16 %v254, %v254
    %v271 = vpack.c.bf16 %v255, %v255
    %v272 = vpack.c.bf16 %v256, %v256
    %v273 = vpack.c.bf16 %v257, %v257
    %v274 = vpack.c.bf16 %v258, %v258
    %v275 = vpack.c.bf16 %v259, %v259
    %v276 = vpack.c.bf16 %v260, %v260
    %v277 = vpack.c.bf16 %v261, %v261
    %v278 = vpack.c.bf16 %v262, %v262
    %v279 = vpack.c.bf16 %v263, %v263
    %280 = vst [vmem:[%s2] sm:$0xf] %v264
    %281 = vst [vmem:[%s2 + $0x4] sm:$0xf] %v265
    %282 = vst [vmem:[%s2 + $0x8] sm:$0xf] %v266
    %283 = vst [vmem:[%s2 + $0xc] sm:$0xf] %v267
    %284 = vst [vmem:[%s2 + $0x10] sm:$0xf] %v268
    %285 = vst [vmem:[%s2 + $0x14] sm:$0xf] %v269
    %286 = vst [vmem:[%s2 + $0x18] sm:$0xf] %v270
    %287 = vst [vmem:[%s2 + $0x1c] sm:$0xf] %v271
    %288 = vst [vmem:[%s2 + $0x20] sm:$0xf] %v272
    %289 = vst [vmem:[%s2 + $0x24] sm:$0xf] %v273
    %290 = vst [vmem:[%s2 + $0x28] sm:$0xf] %v274
    %291 = vst [vmem:[%s2 + $0x2c] sm:$0xf] %v275
    %292 = vst [vmem:[%s2 + $0x30] sm:$0xf] %v276
    %293 = vst [vmem:[%s2 + $0x34] sm:$0xf] %v277
    %294 = vst [vmem:[%s2 + $0x38] sm:$0xf] %v278
    %295 = vst [vmem:[%s2 + $0x3c] sm:$0xf] %v279
    %v296 = vadd.f32 %v248, %v249
    %v297 = vadd.f32 %v296, %v250
    %v298 = vadd.f32 %v297, %v251
    %v299 = vadd.f32 %v298, %v252
    %v300 = vadd.f32 %v299, %v253
    %v301 = vadd.f32 %v300, %v254
    %v302 = vadd.f32 %v301, %v255
    %v303 = vadd.f32 %v302, %v256
    %v304 = vadd.f32 %v303, %v257
    %v305 = vadd.f32 %v304, %v258
    %v306 = vadd.f32 %v305, %v259
    %v307 = vadd.f32 %v306, %v260
    %v308 = vadd.f32 %v307, %v261
    %v309 = vadd.f32 %v308, %v262
    %v310 = vadd.f32 %v309, %v263
    %v311 = vrot.slane %v310, 4
    %v312 = vadd.f32 %v310, %v311
    %v313 = vrot.slane %v312, 2
    %v314 = vadd.f32 %v312, %v313
    %v315 = vrot.slane %v314, 1
    %v316 = vadd.f32 %v314, %v315
    %v317 = vmul.f32 %v248, %v248
    %v318 = vmul.f32 %v249, %v249
    %v319 = vmul.f32 %v250, %v250
    %v320 = vmul.f32 %v251, %v251
    %v321 = vmul.f32 %v252, %v252
    %v322 = vmul.f32 %v253, %v253
    %v323 = vmul.f32 %v254, %v254
    %v324 = vmul.f32 %v255, %v255
    %v325 = vmul.f32 %v256, %v256
    %v326 = vmul.f32 %v257, %v257
    %v327 = vmul.f32 %v258, %v258
    %v328 = vmul.f32 %v259, %v259
    %v329 = vmul.f32 %v260, %v260
    %v330 = vmul.f32 %v261, %v261
    %v331 = vmul.f32 %v262, %v262
    %v332 = vmul.f32 %v263, %v263
    %v333 = vadd.f32 %v317, %v318
    %v334 = vadd.f32 %v333, %v319
    %v335 = vadd.f32 %v334, %v320
    %v336 = vadd.f32 %v335, %v321
    %v337 = vadd.f32 %v336, %v322
    %v338 = vadd.f32 %v337, %v323
    %v339 = vadd.f32 %v338, %v324
    %v340 = vadd.f32 %v339, %v325
    %v341 = vadd.f32 %v340, %v326
    %v342 = vadd.f32 %v341, %v327
    %v343 = vadd.f32 %v342, %v328
    %v344 = vadd.f32 %v343, %v329
    %v345 = vadd.f32 %v344, %v330
    %v346 = vadd.f32 %v345, %v331
    %v347 = vadd.f32 %v346, %v332
    %v348 = vrot.slane %v347, 4
    %v349 = vadd.f32 %v347, %v348
    %v350 = vrot.slane %v349, 2
    %v351 = vadd.f32 %v349, %v350
    %v352 = vrot.slane %v351, 1
    %v353 = vadd.f32 %v351, %v352
    %354 = vst [vmem:[%s3] sm:$0xff] %v316
    %355 = vst [vmem:[%s4] sm:$0xff] %v353
  $region17: #{conv_block.2} parent=0 // pred_fallthru
    _
  // Predicated region
  $region18: #{conv_block.2} parent=0 // pred_check
    _
  $region19: #{conv_block.2} parent=0 // pred_check_branch
    %357 = sbr.rel (0) target = $region21
  $region20: #{conv_block.2} parent=0 // pred_region
    _
  $region21: #{conv_block.2} parent=0 // pred_fallthru
    _
  // Predicated region
  $region22: #{conv_block.2} parent=0 // pred_check
    _
  $region23: #{conv_block.2} parent=0 // pred_check_branch
    %359 = sbr.rel (0) target = $region25
  $region24: #{conv_block.2} parent=0 // pred_region
    _
  $region25: #{conv_block.2} parent=0 // pred_fallthru
    _
  // Predicated region
  $region26: #{conv_block.2} parent=0 // pred_check
    _
  $region27: #{conv_block.2} parent=0 // pred_check_branch
    %361 = sbr.rel (0) target = $region29
  $region28: #{conv_block.2} parent=0 // pred_region
    _
  $region29: #{conv_block.2} parent=0 // pred_fallthru
    _
  // Predicated region
  $region30: #{conv_block.2} parent=0 // pred_check
    _
  $region31: #{conv_block.2} parent=0 // pred_check_branch
    %363 = sbr.rel (0) target = $region33
  $region32: #{conv_block.2} parent=0 // pred_region
    _
  $region33: #{conv_block.2} parent=0 // pred_fallthru
    _
  // Predicated region
  $region34: #{conv_block.2} parent=0 // pred_check
    _
  $region35: #{conv_block.2} parent=0 // pred_check_branch
    %365 = sbr.rel (0) target = $region37
  $region36: #{conv_block.2} parent=0 // pred_region
    _
  $region37: #{conv_block.2} parent=0 // pred_fallthru
    _
  // Predicated region
  $region38: #{conv_block.2} parent=0 // pred_check
    _
  $region39: #{conv_block.2} parent=0 // pred_check_branch
    %367 = sbr.rel (0) target = $region41
  $region40: #{conv_block.2} parent=0 // pred_region
    _
  $region41: #{conv_block.2} parent=0 // pred_fallthru
    _

</llo_original>
